<compile_context>
chip_gen: v7x
topology: tpu7x:2x2x1
jax: 0.10.0
libtpu: 0.0.40
codegen_flags: <defaults>
</compile_context>

<pallas_src>
import functools

import jax
import jax.numpy as jnp
from jax.experimental import pallas as pl
from jax.experimental.pallas import tpu as pltpu


def _focal_kernel(p_ref, t_ref, out_ref, acc_ref, *, total_count, alpha, gamma):
    i = pl.program_id(0)

    @pl.when(i == 0)
    def _():
        acc_ref[...] = jnp.zeros_like(acc_ref)

    # Cast to f32 on the VPU; inputs arrive in their native dtype.
    p = p_ref[...].astype(jnp.float32)
    t = t_ref[...].astype(jnp.float32)

    # PyTorch's binary_cross_entropy clamps the log terms at -100.
    log_p = jnp.maximum(jnp.log(p), jnp.float32(-100.0))
    log_1mp = jnp.maximum(jnp.log1p(-p), jnp.float32(-100.0))
    # -(t*log_p + (1-t)*log_1mp) with one fewer multiply per element.
    bce_elem = -(log_1mp + t * (log_p - log_1mp))

    # Reduce the row tile only down to an (8, cols) vreg-shaped partial sum:
    # pure VPU adds, no per-step cross-lane (XLU) reduce, no SMEM round-trip.
    rt, cols = bce_elem.shape
    acc_ref[...] += bce_elem.reshape(rt // 8, 8, cols).sum(axis=0)

    @pl.when(i == pl.num_programs(0) - 1)
    def _():
        # Single cross-lane reduce + focal transform, done exactly once.
        mean_bce = jnp.sum(acc_ref[...]) / jnp.float32(total_count)
        loss = jnp.float32(alpha) * (1.0 - jnp.exp(-mean_bce)) ** gamma * mean_bce
        out_ref[0, 0] = loss


def _sublane_multiple(dtype):
    return {4: 8, 2: 16, 1: 32}.get(jnp.dtype(dtype).itemsize, 8)


def focal_loss_pallas(inputs, targets, alpha=0.25, gamma=2, *,
                      target_tile_bytes=2 << 20):
    """FocalLoss forward.

    inputs:  (B, N, 1) probabilities in [0, 1]  (any float dtype, e.g. bf16/f32)
    targets: (B, N) labels                      (any dtype castable to float)
    """
    p = jnp.squeeze(inputs, axis=2)  # view; keep native dtype (no f32 HBM copy)
    t = targets
    assert p.shape == t.shape
    B, N = p.shape
    total_count = B * N

    # Flatten to a lane-dense (rows, 128) layout when possible; otherwise keep
    # the natural (B, N) layout (full-N blocks satisfy the block-shape rule).
    LANE = 128
    if total_count % LANE == 0:
        rows, cols = total_count // LANE, LANE
    else:
        rows, cols = B, N
    p2 = p.reshape(rows, cols)
    t2 = t.reshape(rows, cols)

    # Row tile: sublane-aligned for both dtypes, sized so the double-buffered
    # pair of input tiles stays well inside every generation's VMEM budget
    # (v5e 16 MiB default scoped, v7x 64 MiB physical).
    sub = max(_sublane_multiple(p2.dtype), _sublane_multiple(t2.dtype))
    itemsize = max(jnp.dtype(p2.dtype).itemsize, jnp.dtype(t2.dtype).itemsize)
    cap_rows = max(sub, (target_tile_bytes // (cols * itemsize)) // sub * sub)
    row_tile = int(min(cap_rows, pl.cdiv(rows, sub) * sub))
    rows_padded = pl.cdiv(rows, row_tile) * row_tile

    if rows_padded != rows:
        # Pad with (p=1, t=1): contributes exactly 0 to the BCE sum
        # (t*log(1) = 0 and (1-t)*clamped_log(0) = 0 * -100 = 0).
        pad = rows_padded - rows
        p2 = jnp.concatenate([p2, jnp.ones((pad, cols), p2.dtype)], axis=0)
        t2 = jnp.concatenate([t2, jnp.ones((pad, cols), t2.dtype)], axis=0)

    grid = (rows_padded // row_tile,)
    kernel = functools.partial(
        _focal_kernel, total_count=total_count, alpha=float(alpha), gamma=gamma)

    out = pl.pallas_call(
        kernel,
        out_shape=jax.ShapeDtypeStruct((1, 1), jnp.float32),
        grid_spec=pltpu.PrefetchScalarGridSpec(
            num_scalar_prefetch=0,
            grid=grid,
            in_specs=[
                pl.BlockSpec((row_tile, cols), lambda i: (i, 0)),
                pl.BlockSpec((row_tile, cols), lambda i: (i, 0)),
            ],
            out_specs=pl.BlockSpec((1, 1), lambda i: (0, 0),
                                   memory_space=pltpu.SMEM),
            scratch_shapes=[pltpu.VMEM((8, cols), jnp.float32)],
        ),
        compiler_params=pltpu.CompilerParams(
            dimension_semantics=("arbitrary",),
            vmem_limit_bytes=48 * 1024 * 1024,
        ),
    )(p2, t2)
    # TODO(synk): on v7x, shard the grid across both TensorCores (leading
    # "parallel" axis of size 2 with per-core partial sums combined outside).
    return out[0, 0]


def focal_loss_ref(inputs, targets, alpha=0.25, gamma=2):
    p = jnp.squeeze(inputs, axis=2).astype(jnp.float32)
    t = targets.astype(jnp.float32)
    log_p = jnp.maximum(jnp.log(p), -100.0)
    log_1mp = jnp.maximum(jnp.log1p(-p), -100.0)
    bce = jnp.mean(-(t * log_p + (1.0 - t) * log_1mp))
    return alpha * (1.0 - jnp.exp(-bce)) ** gamma * bce


if __name__ == "__main__":
    key = jax.random.PRNGKey(0)
    k1, k2, k3, k4 = jax.random.split(key, 4)

    # Primary case: (B, N, 1) f32 probabilities, (B, N) {0,1} labels.
    B, N = 16, 128
    probs = jax.random.uniform(k1, (B, N, 1), jnp.float32, minval=0.01, maxval=0.99)
    labels = (jax.random.uniform(k2, (B, N), jnp.float32) > 0.5).astype(jnp.float32)
    loss = focal_loss_pallas(probs, labels, alpha=0.25, gamma=2)
    jax.block_until_ready(loss)
    ref = focal_loss_ref(probs, labels, alpha=0.25, gamma=2)
    assert jnp.allclose(loss, ref, rtol=1e-5, atol=1e-6), (loss, ref)

    # Odd shape: exercises the non-128 column fallback + neutral row padding.
    B2, N2 = 10, 100
    probs2 = jax.random.uniform(k3, (B2, N2, 1), jnp.float32, minval=0.01, maxval=0.99)
    labels2 = (jax.random.uniform(k4, (B2, N2), jnp.float32) > 0.5).astype(jnp.float32)
    loss2 = focal_loss_pallas(probs2, labels2, alpha=0.25, gamma=2)
    jax.block_until_ready(loss2)
    ref2 = focal_loss_ref(probs2, labels2, alpha=0.25, gamma=2)
    assert jnp.allclose(loss2, ref2, rtol=1e-5, atol=1e-6), (loss2, ref2)

    # Native bf16 probabilities: no f32 materialization in the wrapper.
    probs_bf16 = probs.astype(jnp.bfloat16)
    loss3 = focal_loss_pallas(probs_bf16, labels, alpha=0.25, gamma=2)
    jax.block_until_ready(loss3)
    ref3 = focal_loss_ref(probs_bf16, labels, alpha=0.25, gamma=2)
    assert jnp.allclose(loss3, ref3, rtol=1e-4, atol=1e-6), (loss3, ref3)

    print("KERNEL_OK")
</pallas_src>

<mosaic_0001>
module attributes {stable_mosaic.version = 11 : i64} {
  func.func @_focal_kernel(%arg0: i32, %arg1: memref<16x128xf32, #tpu.memory_space<vmem>>, %arg2: memref<16x128xf32, #tpu.memory_space<vmem>>, %arg3: memref<1x1xf32, #tpu.memory_space<smem>>, %arg4: memref<8x128xf32, #tpu.memory_space<vmem>>) attributes {dimension_semantics = [#tpu.dimension_semantics<arbitrary>], iteration_bounds = array<i64: 1>, scalar_prefetch = 0 : i64, scratch_operands = 1 : i64, tpu.core_type = #tpu.core_type<tc>, window_params = [{transform_indices = @transform_0, window_bounds = array<i64: 16, 128>}, {transform_indices = @transform_1, window_bounds = array<i64: 16, 128>}, {transform_indices = @transform_2, window_bounds = array<i64: 1, 1>}]} {
    %c0_i32 = arith.constant 0 : i32
    %0 = arith.cmpi eq, %arg0, %c0_i32 : i32
    %1 = arith.extui %0 : i1 to i32
    %c0_i32_0 = arith.constant 0 : i32
    %2 = arith.cmpi ne, %1, %c0_i32_0 : i32
    scf.if %2 {
      %cst_14 = arith.constant 0.000000e+00 : f32
      %26 = vector.broadcast %cst_14 : f32 to vector<8x128xf32>
      %c0_15 = arith.constant 0 : index
      %c0_16 = arith.constant 0 : index
      %27 = vector.load %arg4[%c0_15, %c0_16] : memref<8x128xf32, #tpu.memory_space<vmem>>, vector<8x128xf32>
      tpu.vector_store %arg4[%c0_15, %c0_16], %26 {strides = array<i32>} : memref<8x128xf32, #tpu.memory_space<vmem>>, vector<8x128xf32>,
    } else {
    }
    %c0 = arith.constant 0 : index
    %c0_1 = arith.constant 0 : index
    %3 = vector.load %arg1[%c0, %c0_1] : memref<16x128xf32, #tpu.memory_space<vmem>>, vector<16x128xf32>
    %c0_2 = arith.constant 0 : index
    %c0_3 = arith.constant 0 : index
    %4 = vector.load %arg2[%c0_2, %c0_3] : memref<16x128xf32, #tpu.memory_space<vmem>>, vector<16x128xf32>
    %5 = math.log %3 : vector<16x128xf32>
    %cst = arith.constant -1.000000e+02 : f32
    %6 = vector.broadcast %cst : f32 to vector<16x128xf32>
    %7 = arith.maximumf %5, %6 : vector<16x128xf32>
    %cst_4 = arith.constant 0.000000e+00 : f32
    %8 = vector.broadcast %cst_4 : f32 to vector<16x128xf32>
    %9 = arith.subf %8, %3 : vector<16x128xf32>
    %10 = math.log1p %9 : vector<16x128xf32>
    %cst_5 = arith.constant -1.000000e+02 : f32
    %11 = vector.broadcast %cst_5 : f32 to vector<16x128xf32>
    %12 = arith.maximumf %10, %11 : vector<16x128xf32>
    %13 = arith.subf %7, %12 : vector<16x128xf32>
    %14 = arith.mulf %4, %13 : vector<16x128xf32>
    %15 = arith.addf %12, %14 : vector<16x128xf32>
    %cst_6 = arith.constant 0.000000e+00 : f32
    %16 = vector.broadcast %cst_6 : f32 to vector<16x128xf32>
    %17 = arith.subf %16, %15 : vector<16x128xf32>
    %c0_7 = arith.constant 0 : index
    %c0_8 = arith.constant 0 : index
    %18 = vector.load %arg4[%c0_7, %c0_8] : memref<8x128xf32, #tpu.memory_space<vmem>>, vector<8x128xf32>
    %19 = vector.shape_cast %17 : vector<16x128xf32> to vector<2x8x128xf32>
    %cst_9 = arith.constant dense<0.000000e+00> : vector<8x128xf32>
    %20 = vector.multi_reduction <add>, %19, %cst_9 [0] : vector<2x8x128xf32> to vector<8x128xf32>
    %21 = arith.addf %18, %20 : vector<8x128xf32>
    %c0_10 = arith.constant 0 : index
    %c0_11 = arith.constant 0 : index
    %22 = vector.load %arg4[%c0_10, %c0_11] : memref<8x128xf32, #tpu.memory_space<vmem>>, vector<8x128xf32>
    tpu.vector_store %arg4[%c0_10, %c0_11], %21 {strides = array<i32>} : memref<8x128xf32, #tpu.memory_space<vmem>>, vector<8x128xf32>,
    %c0_i32_12 = arith.constant 0 : i32
    %23 = arith.cmpi eq, %arg0, %c0_i32_12 : i32
    %24 = arith.extui %23 : i1 to i32
    %c0_i32_13 = arith.constant 0 : i32
    %25 = arith.cmpi ne, %24, %c0_i32_13 : i32
    scf.if %25 {
      %c0_14 = arith.constant 0 : index
      %c0_15 = arith.constant 0 : index
      %26 = vector.load %arg4[%c0_14, %c0_15] : memref<8x128xf32, #tpu.memory_space<vmem>>, vector<8x128xf32>
      %27 = vector.shape_cast %26 : vector<8x128xf32> to vector<1x8x128xf32>
      %cst_16 = arith.constant dense<0.000000e+00> : vector<1xf32>
      %28 = vector.multi_reduction <add>, %27, %cst_16 [1, 2] : vector<1x8x128xf32> to vector<1xf32>
      %29 = vector.shape_cast %28 : vector<1xf32> to vector<1x1x1xf32>
      %30 = vector.extract %29[0, 0, 0] : f32 from vector<1x1x1xf32>
      %cst_17 = arith.constant 2.048000e+03 : f32
      %31 = arith.divf %30, %cst_17 : f32
      %cst_18 = arith.constant 0.000000e+00 : f32
      %32 = arith.subf %cst_18, %31 : f32
      %33 = math.exp %32 : f32
      %cst_19 = arith.constant 1.000000e+00 : f32
      %34 = arith.subf %cst_19, %33 : f32
      %35 = arith.mulf %34, %34 : f32
      %cst_20 = arith.constant 2.500000e-01 : f32
      %36 = arith.mulf %cst_20, %35 : f32
      %37 = arith.mulf %36, %31 : f32
      %c0_21 = arith.constant 0 : index
      %c0_22 = arith.constant 0 : index
      %38 = memref.load %arg3[%c0_21, %c0_22] : memref<1x1xf32, #tpu.memory_space<smem>>
      memref.store %37, %arg3[%c0_21, %c0_22] : memref<1x1xf32, #tpu.memory_space<smem>>
    } else {
    }
    return
  }
  func.func @transform_0(%arg0: i32) -> (i32, i32) {
    %c0_i32 = arith.constant 0 : i32
    %c0_i32_0 = arith.constant 0 : i32
    return %arg0, %c0_i32 : i32, i32
  }
  func.func @transform_1(%arg0: i32) -> (i32, i32) {
    %c0_i32 = arith.constant 0 : i32
    %c0_i32_0 = arith.constant 0 : i32
    return %arg0, %c0_i32 : i32, i32
  }
  func.func @transform_2(%arg0: i32) -> (i32, i32) {
    %c0_i32 = arith.constant 0 : i32
    %c0_i32_0 = arith.constant 0 : i32
    %c0_i32_1 = arith.constant 0 : i32
    return %c0_i32, %c0_i32_0 : i32, i32
  }
}

</mosaic_0001>

<llo_original>
// kernel: tpu_custom_call.1
$region0: #{tpu_custom_call.1}
  #allocation0 [shape = 'u32[]', space=smem, size = 0x4, offset = 0x4, fixed_abs, tag = 'smem constant byte address 0x4 - core index']
  #allocation1 [shape = 'u32[144,128]{1,0:T(1,128)}', space=vmem, size = 0x12000, scoped, tag = 'internal scratch']
  #allocation2 [shape = 'f32[8,128]{1,0:T(8,128)}', space=vmem, size = 0x1000, scoped, tag = 'scratch operand']
  %s0 = inlined_call_operand.hbm [shape: f32[16,128], index: 0, kind: input, shape index: {}]
  %s1 = inlined_call_operand.hbm [shape: f32[16,128], index: 1, kind: input, shape index: {}]
  %s2 = inlined_call_operand.hbm [shape: f32[1,1], index: 2, kind: output, shape index: {}]
  %s3 = sld [smem:[#allocation0]]
  $region34: #{tpu_custom_call.1} parent=0
    _
  %s5 = ssub.s32 1, %s3
  %s6 = scalar_select 0, %s5, %s3
  $region1: #{tpu_custom_call.1} parent=0
    #allocation3 [shape = 'u8[8192]{0}', space=vmem, size = 0x2000, scoped, tag = 'input window, operand 0, single buffered']
    #allocation4 [shape = 's32[1]{0}', space=sflag, size = 0x4, scoped, tag = 'scoped memory for tpu_custom_call.1']
    #allocation5 [shape = 's32[1]{0}', space=sflag, size = 0x4, scoped, tag = 'scoped memory for tpu_custom_call.1']
    #allocation6 [shape = 'u8[8192]{0}', space=vmem, size = 0x2000, scoped, tag = 'input window, operand 1, single buffered']
    #allocation7 [shape = 's32[1]{0}', space=sflag, size = 0x4, scoped, tag = 'scoped memory for tpu_custom_call.1']
    #allocation8 [shape = 'u8[512]{0}', space=smem, size = 0x200, scoped, tag = 'output window, operand 0, single buffered']
    %7 = vsyncpa [#allocation4], 0
    %8 = vsyncpa [#allocation7], 0
    %9 = vsyncpa [#allocation5], 0
    // Predicated region
    $region2: #{tpu_custom_call.1} parent=1 // pred_check
      _
    $region3: #{tpu_custom_call.1} parent=1 // pred_check_branch
      %11 = sbr.rel (0) target = $region5
    $region4: #{tpu_custom_call.1} parent=1 // pred_region
      %s13 = ssub.s32 256, 256
      %14 = vsyncadd [#allocation4], %s13
      %s15 = sshll.u32 [#allocation3], 4
      %s16 = int_to_ptr.vmem [resolvable:$true] %s15
      %21 = dma.hbm_to_vmem [thread:$0]  %s0, 256, %s16, [#allocation4], 128, 128, 8
    $region5: #{tpu_custom_call.1} parent=1 // pred_fallthru
      _
    // Predicated region
    $region6: #{tpu_custom_call.1} parent=1 // pred_check
      _
    $region7: #{tpu_custom_call.1} parent=1 // pred_check_branch
      %23 = sbr.rel (0) target = $region9
    $region8: #{tpu_custom_call.1} parent=1 // pred_region
      %s25 = ssub.s32 256, 256
      %26 = vsyncadd [#allocation7], %s25
      %s27 = sshll.u32 [#allocation6], 4
      %s28 = int_to_ptr.vmem [resolvable:$true] %s27
      %33 = dma.hbm_to_vmem [thread:$0]  %s1, 256, %s28, [#allocation7], 128, 128, 8
    $region9: #{tpu_custom_call.1} parent=1 // pred_fallthru
      _
    // Predicated region
    $region10: #{tpu_custom_call.1} parent=1 // pred_check
      _
    $region11: #{tpu_custom_call.1} parent=1 // pred_check_branch
      %35 = sbr.rel (0) target = $region13
    $region12: #{tpu_custom_call.1} parent=1 // pred_region
      %36 = dma.done [#allocation4], 256
    $region13: #{tpu_custom_call.1} parent=1 // pred_fallthru
      _
    // Predicated region
    $region14: #{tpu_custom_call.1} parent=1 // pred_check
      _
    $region15: #{tpu_custom_call.1} parent=1 // pred_check_branch
      %38 = sbr.rel (0) target = $region17
    $region16: #{tpu_custom_call.1} parent=1 // pred_region
      %39 = dma.done [#allocation7], 256
    $region17: #{tpu_custom_call.1} parent=1 // pred_fallthru
      _
    %p40 = scmp.eq.s32.totalorder 0, 0
    // Predicated region
    $region18: #{tpu_custom_call.1} parent=1 // pred_check
      %p41 = pneg %p40
    $region19: #{tpu_custom_call.1} parent=1 // pred_check_branch
      %43 = sbr.rel (%p41) target = $region21
    $region20: #{tpu_custom_call.1} parent=1 // pred_region
      %44 = vst [vmem:[#allocation2] sm:$0xff] 0.0
    $region21: #{tpu_custom_call.1} parent=1 // pred_fallthru
      _
    %v45 = vld [vmem:[#allocation3] sm:$0xff]
    %v46 = vld [vmem:[#allocation3 + $0x8] sm:$0xff]
    %v47 = vld [vmem:[#allocation6] sm:$0xff]
    %v48 = vld [vmem:[#allocation6 + $0x8] sm:$0xff]
    %v49 = vlog2.pop %v45
    %v50 = vmul.f32 %v49, 0.6931472
    %v51 = vlog2.pop %v46
    %v52 = vmul.f32 %v51, 0.6931472
    %v53 = vmax.f32 %v50, -100.0
    %v54 = vmax.f32 %v52, -100.0
    %v55 = vsub.f32 0.0, %v45
    %v56 = vsub.f32 0.0, %v46
    %v57 = vadd.f32 %v55, 1.0
    %v58 = vlog2.pop %v57
    %v59 = vmul.f32 %v58, 0.6931472
    %v60 = vmul.f32 -0.5, %v55
    %v61 = vadd.f32 %v60, 1.0
    %v62 = vmul.f32 %v61, %v55
    %v63 = vand.u32 2147483647, %v55
    %vm64 = vcmp.lt.f32.partialorder %v63, 0.0004427343
    %v65 = vsel %vm64, %v62, %v59
    %v66 = vadd.f32 %v56, 1.0
    %v67 = vlog2.pop %v66
    %v68 = vmul.f32 %v67, 0.6931472
    %v69 = vmul.f32 -0.5, %v56
    %v70 = vadd.f32 %v69, 1.0
    %v71 = vmul.f32 %v70, %v56
    %v72 = vand.u32 2147483647, %v56
    %vm73 = vcmp.lt.f32.partialorder %v72, 0.0004427343
    %v74 = vsel %vm73, %v71, %v68
    %v75 = vmax.f32 %v65, -100.0
    %v76 = vmax.f32 %v74, -100.0
    %v77 = vsub.f32 %v53, %v75
    %v78 = vsub.f32 %v54, %v76
    %v79 = vmul.f32 %v47, %v77
    %v80 = vmul.f32 %v48, %v78
    %v81 = vadd.f32 %v75, %v79
    %v82 = vadd.f32 %v76, %v80
    %v83 = vsub.f32 0.0, %v81
    %v84 = vsub.f32 0.0, %v82
    %v85 = vld [vmem:[#allocation2] sm:$0xff]
    %v86 = vadd.f32 %v83, %v84
    %v87 = vadd.f32 %v85, %v86
    %88 = vst [vmem:[#allocation2] sm:$0xff] %v87
    // Predicated region
    $region22: #{tpu_custom_call.1} parent=1 // pred_check
      %p89 = pneg %p40
    $region23: #{tpu_custom_call.1} parent=1 // pred_check_branch
      %91 = sbr.rel (%p89) target = $region25
    $region24: #{tpu_custom_call.1} parent=1 // pred_region
      %v92 = vld [vmem:[#allocation2] sm:$0xff]
      %93 = vadd.xlane.f32.xlu0 %v92
      %v94 = vpop.xlane.xlu0 %93
      %v95 = vrot.slane %v94, 4
      %v96 = vadd.f32 %v94, %v95
      %v97 = vrot.slane %v96, 2
      %v98 = vadd.f32 %v96, %v97
      %v99 = vrot.slane %v98, 1
      %v100 = vadd.f32 %v98, %v99
      %s101 = vtos %v100
      %v102 = vrcp.pop 2048.0
      %s103 = vtos %v102
      %s104 = smul.f32 %s101, %s103
      %s105 = ssub.f32 0.0, %s104
      %v106 = vstv %s105
      %v107 = vmul.f32 %v106, 1.442695
      %v108 = vpow.pop %v107
      %s109 = vtos %v108
      %s110 = ssub.f32 1.0, %s109
      %s111 = smul.f32 %s110, %s110
      %s112 = smul.f32 %s111, 0.25
      %s113 = smul.f32 %s112, %s104
      %s114 = scalar_lea.smem [#allocation8], 0
      %115 = sst [smem:[%s114]] %s113
    $region25: #{tpu_custom_call.1} parent=1 // pred_fallthru
      _
    // Predicated region
    $region26: #{tpu_custom_call.1} parent=1 // pred_check
      _
    $region27: #{tpu_custom_call.1} parent=1 // pred_check_branch
      %117 = sbr.rel (0) target = $region29
    $region28: #{tpu_custom_call.1} parent=1 // pred_region
      %s119 = ssub.s32 16, 16
      %120 = vsyncadd [#allocation5], %s119
      %123 = dma.smem_to_hbm [#allocation8], 16, %s2, [#allocation5]
    $region29: #{tpu_custom_call.1} parent=1 // pred_fallthru
      _
    // Predicated region
    $region30: #{tpu_custom_call.1} parent=1 // pred_check
      _
    $region31: #{tpu_custom_call.1} parent=1 // pred_check_branch
      %125 = sbr.rel (0) target = $region33
    $region32: #{tpu_custom_call.1} parent=1 // pred_region
      %126 = dma.done [#allocation5], 16
    $region33: #{tpu_custom_call.1} parent=1 // pred_fallthru
      _
    %127 = sfence
    %128 = vsyncpa [#allocation4], 1
    %129 = vsyncpa [#allocation7], 1
    %130 = vsyncpa [#allocation5], 1

</llo_original>
